<compile_context>
chip_gen: v7x
topology: tpu7x:2x2x1
jax: 0.10.0
libtpu: 0.0.40
codegen_flags: <defaults>
</compile_context>

<pallas_src>
import jax
import jax.numpy as jnp
from jax.experimental import pallas as pl
from jax.experimental.pallas import tpu as pltpu

_LANE = 128
_SUBLANE = 8
# ~2 MiB per block: well past the measured HBM-roofline knee (512x128 f32 rows
# already ~85% of roofline, 1024+ ~86%) while keeping 4 double-buffers small.
_TARGET_BLOCK_BYTES = 2 * 1024 * 1024
# Lane widths tried (largest first) for a lane-dense 2D slab.
_LANE_WIDTHS = (16384, 8192, 4096, 2048, 1024, 512, 256, 128)
# Ragged tensors up to this many bytes are copied as one full-array block
# (block_shape == array shape is exempt from the (8,128) divisibility rule),
# avoiding the pad/trim round trip entirely.
_SINGLE_BLOCK_BYTES = 1 * 1024 * 1024


def _copy_kernel(x_ref, o_ref):
    # Straight VMEM tile copy; all the work is in the surrounding DMA pipeline.
    o_ref[...] = x_ref[...]


def _block_rows(rows, lanes, itemsize):
    """Largest sublane-aligned row count <= rows giving ~_TARGET_BLOCK_BYTES."""
    target = (_TARGET_BLOCK_BYTES // (lanes * itemsize)) // _SUBLANE * _SUBLANE
    target = max(_SUBLANE, target)
    return min(rows, target)


def _pallas_copy_2d(x2d, block_rows):
    """Tiled identity copy of a 2D (rows, lanes) slab."""
    rows, lanes = x2d.shape
    nbytes = x2d.size * x2d.dtype.itemsize
    grid = (pl.cdiv(rows, block_rows),)
    return pl.pallas_call(
        _copy_kernel,
        out_shape=jax.ShapeDtypeStruct(x2d.shape, x2d.dtype),
        grid_spec=pltpu.PrefetchScalarGridSpec(
            num_scalar_prefetch=0,
            grid=grid,
            in_specs=[pl.BlockSpec((block_rows, lanes), lambda i: (i, 0))],
            out_specs=pl.BlockSpec((block_rows, lanes), lambda i: (i, 0)),
        ),
        compiler_params=pltpu.CompilerParams(
            dimension_semantics=("parallel",),
        ),
        # Identity writes back the same bytes: let the output alias the input
        # HBM buffer (no second allocation; XLA may elide surrounding copies).
        input_output_aliases={0: 0},
        # Bandwidth-only op: read n bytes, write n bytes, zero flops.
        cost_estimate=pl.CostEstimate(
            flops=0, transcendentals=0, bytes_accessed=2 * nbytes),
    )(x2d)


def identity_pallas(x):
    """Identity forward pass (y = x) as a Pallas TPU copy kernel."""
    orig_shape = x.shape
    n = x.size
    if n == 0:
        return x  # empty tensor: nothing to copy

    itemsize = x.dtype.itemsize
    flat = x.reshape(-1)

    if n % _LANE == 0:
        # Common case: no padding at all. Pick the widest lane dimension that
        # divides n so stores are unmasked and each block DMA is one large
        # contiguous descriptor, then block ~2 MiB worth of rows per grid step.
        lanes = next(w for w in _LANE_WIDTHS if n % w == 0)
        rows = n // lanes
        x2d = flat.reshape(rows, lanes)
        out2d = _pallas_copy_2d(x2d, _block_rows(rows, lanes, itemsize))
        return out2d.reshape(orig_shape)

    if n * itemsize <= _SINGLE_BLOCK_BYTES:
        # Small ragged tensor: a single block equal to the full array shape is
        # exempt from the (8,128) divisibility rule -> copy directly with no
        # padding and no trim pass.
        x2d = flat.reshape(1, n)
        out2d = _pallas_copy_2d(x2d, 1)
        return out2d.reshape(orig_shape)

    # Large ragged fallback (element count not a multiple of 128): pad only to
    # the next lane boundary (< 128 extra elements), copy, then trim.
    n_pad = pl.cdiv(n, _LANE) * _LANE
    flat = jnp.pad(flat, (0, n_pad - n))
    rows = n_pad // _LANE
    x2d = flat.reshape(rows, _LANE)
    out2d = _pallas_copy_2d(x2d, _block_rows(rows, _LANE, itemsize))
    return out2d.reshape(-1)[:n].reshape(orig_shape)


if __name__ == "__main__":
    key = jax.random.PRNGKey(0)

    # Primary example: small NCHW input (batch=2, channels=4, 16x16 spatial).
    x = jax.random.normal(key, (2, 4, 16, 16), dtype=jnp.float32)
    y = jax.block_until_ready(identity_pallas(x))
    assert y.shape == x.shape, (y.shape, x.shape)
    assert y.dtype == x.dtype, (y.dtype, x.dtype)
    assert bool(jnp.array_equal(y, x)), "Identity kernel output mismatch"

    # Extra sanity checks covering the other code paths.
    # Multi-block tiled path (lane-dense slab, several grid steps).
    x_big = jax.random.normal(key, (2048, 1024), dtype=jnp.bfloat16)
    y_big = jax.block_until_ready(identity_pallas(x_big))
    assert y_big.dtype == x_big.dtype
    assert bool(jnp.array_equal(y_big, x_big)), "tiled path mismatch"

    # Ragged path (element count not a multiple of 128, single-block copy).
    x_rag = jax.random.normal(key, (3, 5, 7), dtype=jnp.float32)
    y_rag = jax.block_until_ready(identity_pallas(x_rag))
    assert bool(jnp.array_equal(y_rag, x_rag)), "ragged path mismatch"

    print("KERNEL_OK")
</pallas_src>

<mosaic_0001>
module attributes {stable_mosaic.version = 11 : i64} {
  func.func @_copy_kernel(%arg0: i32, %arg1: memref<1x2048xf32, #tpu.memory_space<vmem>>, %arg2: memref<1x2048xf32, #tpu.memory_space<vmem>>) attributes {dimension_semantics = [#tpu.dimension_semantics<parallel>], iteration_bounds = array<i64: 1>, scalar_prefetch = 0 : i64, scratch_operands = 0 : i64, tpu.core_type = #tpu.core_type<tc>, window_params = [{transform_indices = @transform_0, window_bounds = array<i64: 1, 2048>}, {transform_indices = @transform_1, window_bounds = array<i64: 1, 2048>}]} {
    %c0 = arith.constant 0 : index
    %c0_0 = arith.constant 0 : index
    %0 = vector.load %arg1[%c0, %c0_0] : memref<1x2048xf32, #tpu.memory_space<vmem>>, vector<1x2048xf32>
    %c0_1 = arith.constant 0 : index
    %c0_2 = arith.constant 0 : index
    %1 = vector.load %arg2[%c0_1, %c0_2] : memref<1x2048xf32, #tpu.memory_space<vmem>>, vector<1x2048xf32>
    tpu.vector_store %arg2[%c0_1, %c0_2], %0 {strides = array<i32>} : memref<1x2048xf32, #tpu.memory_space<vmem>>, vector<1x2048xf32>,
    return
  }
  func.func @transform_0(%arg0: i32) -> (i32, i32) {
    %c0_i32 = arith.constant 0 : i32
    %c0_i32_0 = arith.constant 0 : i32
    return %arg0, %c0_i32 : i32, i32
  }
  func.func @transform_1(%arg0: i32) -> (i32, i32) {
    %c0_i32 = arith.constant 0 : i32
    %c0_i32_0 = arith.constant 0 : i32
    return %arg0, %c0_i32 : i32, i32
  }
}

</mosaic_0001>

<llo_original>
// kernel: tpu_custom_call.1
$region0: #{tpu_custom_call.1}
  #allocation0 [shape = 'u32[]', space=smem, size = 0x4, offset = 0x4, fixed_abs, tag = 'smem constant byte address 0x4 - core index']
  #allocation1 [shape = 'u32[144,128]{1,0:T(1,128)}', space=vmem, size = 0x12000, scoped, tag = 'internal scratch']
  %s0 = inlined_call_operand.hbm [shape: f32[1,2048], index: 0, kind: input, shape index: {}, may-alias: {0,1}]
  %s1 = inlined_call_operand.hbm [shape: f32[1,2048], index: 1, kind: output, shape index: {}, may-alias: {0,1}]
  %s2 = sld [smem:[#allocation0]]
  $region18: #{tpu_custom_call.1} parent=0
    _
  %s4 = ssub.s32 1, %s2
  %s5 = scalar_select 0, %s4, %s2
  $region1: #{tpu_custom_call.1} parent=0
    #allocation2 [shape = 'u8[8192]{0}', space=vmem, size = 0x2000, scoped, tag = 'input window, operand 0, single buffered']
    #allocation3 [shape = 's32[1]{0}', space=sflag, size = 0x4, scoped, tag = 'scoped memory for tpu_custom_call.1']
    #allocation4 [shape = 's32[1]{0}', space=sflag, size = 0x4, scoped, tag = 'scoped memory for tpu_custom_call.1']
    #allocation5 [shape = 'u8[8192]{0}', space=vmem, size = 0x2000, scoped, tag = 'output window, operand 0, single buffered']
    %6 = vsyncpa [#allocation3], 0
    %7 = vsyncpa [#allocation4], 0
    // Predicated region
    $region2: #{tpu_custom_call.1} parent=1 // pred_check
      _
    $region3: #{tpu_custom_call.1} parent=1 // pred_check_branch
      %9 = sbr.rel (0) target = $region5
    $region4: #{tpu_custom_call.1} parent=1 // pred_region
      %s11 = ssub.s32 256, 256
      %12 = vsyncadd [#allocation3], %s11
      %s14 = sshll.u32 [#allocation2], 4
      %s15 = int_to_ptr.vmem [resolvable:$true] %s14
      %17 = dma.hbm_to_vmem [thread:$0]  %s0, 256, %s15, [#allocation3]
    $region5: #{tpu_custom_call.1} parent=1 // pred_fallthru
      _
    // Predicated region
    $region6: #{tpu_custom_call.1} parent=1 // pred_check
      _
    $region7: #{tpu_custom_call.1} parent=1 // pred_check_branch
      %19 = sbr.rel (0) target = $region9
    $region8: #{tpu_custom_call.1} parent=1 // pred_region
      %20 = dma.done [#allocation3], 256
    $region9: #{tpu_custom_call.1} parent=1 // pred_fallthru
      _
    %v21 = vld [vmem:[#allocation2] sm:$0xff]
    %v22 = vld [vmem:[#allocation2 + $0x8] sm:$0xff]
    %23 = vst [vmem:[#allocation5] sm:$0xff] %v21
    %24 = vst [vmem:[#allocation5 + $0x8] sm:$0xff] %v22
    // Predicated region
    $region10: #{tpu_custom_call.1} parent=1 // pred_check
      _
    $region11: #{tpu_custom_call.1} parent=1 // pred_check_branch
      %26 = sbr.rel (0) target = $region13
    $region12: #{tpu_custom_call.1} parent=1 // pred_region
      %s28 = ssub.s32 256, 256
      %29 = vsyncadd [#allocation4], %s28
      %s31 = sshll.u32 [#allocation5], 4
      %s32 = int_to_ptr.vmem [resolvable:$true] %s31
      %34 = dma.vmem_to_hbm [thread:$0]  %s32, 256, %s1, [#allocation4]
    $region13: #{tpu_custom_call.1} parent=1 // pred_fallthru
      _
    // Predicated region
    $region14: #{tpu_custom_call.1} parent=1 // pred_check
      _
    $region15: #{tpu_custom_call.1} parent=1 // pred_check_branch
      %36 = sbr.rel (0) target = $region17
    $region16: #{tpu_custom_call.1} parent=1 // pred_region
      %37 = dma.done [#allocation4], 256
    $region17: #{tpu_custom_call.1} parent=1 // pred_fallthru
      _
    %38 = vsyncpa [#allocation3], 1
    %39 = vsyncpa [#allocation4], 1

</llo_original>
